<compile_context>
chip_gen: v7x
topology: tpu7x:2x2x1
jax: 0.10.0
libtpu: 0.0.40
codegen_flags: <defaults>
</compile_context>

<pallas_src>
import jax
import jax.numpy as jnp
from jax.experimental import pallas as pl
from jax.experimental.pallas import tpu as pltpu

_LANE = 128
_NEG_PAD = -1e30          # class-axis padding value: exp() == 0, still finite


# ----------------------------------------------------------------------------
# Kernel
# ----------------------------------------------------------------------------
def _make_kernel(true_rows, tile_b, row_steps, need_row_mask):
    def kernel(x_ref, t_ref, out_ref, m_ref, s_ref, tm_ref, tden_ref, tnum_ref):
        c = pl.program_id(0)          # core-split axis ("parallel")
        i = pl.program_id(1)          # row tiles
        k = pl.program_id(2)          # class-axis chunks

        @pl.when(jnp.logical_and(i == 0, k == 0))
        def _init_out():
            out_ref[...] = jnp.zeros_like(out_ref)

        @pl.when(k == 0)
        def _init_carries():
            m_ref[...] = jnp.full(m_ref.shape, -jnp.inf, dtype=jnp.float32)
            s_ref[...] = jnp.zeros_like(s_ref)
            tm_ref[...] = jnp.full(tm_ref.shape, -jnp.inf, dtype=jnp.float32)
            tden_ref[...] = jnp.zeros_like(tden_ref)
            tnum_ref[...] = jnp.zeros_like(tnum_ref)

        # f32 compute keeps the 1e-5 tolerance on every generation; Mosaic
        # fuses the widening converts into the first consuming VPU ops.
        x = x_ref[...].astype(jnp.float32)
        t = t_ref[...].astype(jnp.float32)

        # --- online log-sum-exp of x over the class (lane) axis -------------
        m_prev = m_ref[...]
        m_new = jnp.maximum(m_prev, jnp.max(x, axis=-1, keepdims=True))
        alpha = jnp.exp(m_prev - m_new)                   # 0 on the first chunk
        s_ref[...] = s_ref[...] * alpha + jnp.sum(
            jnp.exp(x - m_new), axis=-1, keepdims=True)
        m_ref[...] = m_new

        # --- online softmax(target)-weighted sum of (unshifted) x -----------
        #     E_softmax(t)[x] = tnum / tden   (the running t-max cancels)
        tm_prev = tm_ref[...]
        tm_new = jnp.maximum(tm_prev, jnp.max(t, axis=-1, keepdims=True))
        beta = jnp.exp(tm_prev - tm_new)
        te = jnp.exp(t - tm_new)
        tden_ref[...] = tden_ref[...] * beta + jnp.sum(te, axis=-1, keepdims=True)
        tnum_ref[...] = tnum_ref[...] * beta + jnp.sum(te * x, axis=-1,
                                                       keepdims=True)
        tm_ref[...] = tm_new

        @pl.when(k == pl.num_programs(2) - 1)
        def _finish_row_tile():
            # Per-row loss: lse(x) - E_softmax(t)[x].  Exact per-row divide
            # (one per row, not per element) keeps the 1e-5 tolerance.
            lse = m_ref[...] + jnp.log(s_ref[...])
            row_loss = lse - tnum_ref[...] / tden_ref[...]       # (tile_b, 1)
            if need_row_mask:
                row0 = (c * row_steps + i) * tile_b
                rows = row0 + jax.lax.broadcasted_iota(
                    jnp.int32, row_loss.shape, 0)
                row_loss = jnp.where(rows < true_rows, row_loss, 0.0)
            # One cross-sublane reduce per row tile; accumulate into the
            # resident (1, 1, 1) output block (per-core partial sum).
            out_ref[...] += jnp.sum(row_loss)

    return kernel


# ----------------------------------------------------------------------------
# Planning helpers
# ----------------------------------------------------------------------------
def _round_up(v, m):
    return ((v + m - 1) // m) * m


def _tpu_vmem_bytes():
    try:
        info = pltpu.get_tpu_info()
        cap = getattr(info, "vmem_capacity_bytes", None)
        if cap:
            return int(cap)
    except Exception:
        pass
    return 64 << 20                     # v7x-safe fallback (v5e/v6e have more)


def _tpu_num_cores():
    try:
        info = pltpu.get_tpu_info()
        for name in ("num_cores", "core_count", "num_tensorcores",
                     "tensorcore_count", "num_cores_per_chip", "cores_per_chip"):
            v = getattr(info, name, None)
            if v:
                return int(v)
    except Exception:
        pass
    return 1


def _best_divisor_tile(B, min_b, cap):
    """Largest divisor of B that is a multiple of min_b and <= cap, preferring
    divisors that give an even tile count (keeps the core-split axis at 2)."""
    best_key, best = None, None
    d = 1
    while d * d <= B:
        if B % d == 0:
            for t in (d, B // d):
                if t % min_b == 0 and t <= cap:
                    key = ((B // t) % 2 == 0, t)
                    if best_key is None or key > best_key:
                        best_key, best = key, t
        d += 1
    return best


def _plan(B, C, x_itemsize, t_itemsize, tile_b=None, tile_c=None):
    vmem_cap = _tpu_vmem_bytes()
    # 96 MiB scoped limit on 128 MiB chips (v5e/v6e), 48 MiB on v7x (64 MiB).
    vmem_limit = min(vmem_cap * 3 // 4, 96 << 20)
    budget = vmem_limit * 7 // 10       # headroom for compiler scratch etc.

    # Packed-sublane row multiple: 8 for 4-byte, 16 for bf16, 32 for int8/fp8.
    min_b = {4: 8, 2: 16, 1: 32}.get(min(x_itemsize, t_itemsize), 8)

    # Peak-live bytes per (row, class) element:
    #   2 pipeline buffers per input (input dtype) + ~4 f32 intermediates.
    per_elem = 2 * (x_itemsize + t_itemsize) + 4 * 4
    # Lane-padded (tile_b, 1) f32 per-row carries / temporaries (~8 of them).
    per_row = 8 * _LANE * 4

    def rows_that_fit(tc):
        return max(0, (budget // (tc * per_elem + per_row)) // min_b) * min_b

    # ---- class (lane) axis --------------------------------------------------
    if tile_c is None:
        if rows_that_fit(C) >= min_b:
            tile_c = C                                   # full row resident
        else:
            # Large vocab: tile the class axis; keep enough rows per step to
            # amortize the ~0.35 us/step overhead; lane-aligned chunks.
            target_rows = max(min_b, _round_up(64, min_b))
            cap_c = max(_LANE, ((budget // target_rows - per_row) // per_elem
                                // _LANE) * _LANE)
            if C % _LANE == 0:
                # Largest multiple-of-128 divisor of C that fits (no padding).
                tile_c, d = _LANE, _LANE
                while d <= min(cap_c, C):
                    if C % d == 0:
                        tile_c = d
                    d += _LANE
            else:
                tile_c = min(cap_c, _round_up(C, _LANE))
    if tile_c >= C:
        tile_c = C
    else:
        assert tile_c % _LANE == 0, "tile_c must be a multiple of 128"
    c_pad = _round_up(C, tile_c)
    class_steps = c_pad // tile_c

    # ---- row (sublane) axis --------------------------------------------------
    if tile_b is None:
        tile_b = max(min_b, min(rows_that_fit(tile_c), _round_up(B, min_b)))
        div = _best_divisor_tile(B, min_b, tile_b)
        if div is not None:
            tile_b = div                                 # avoids a padding copy
    assert tile_b % min_b == 0, (
        f"tile_b={tile_b} must be a multiple of {min_b} for this input dtype")

    b_pad = _round_up(B, tile_b)
    num_tiles = b_pad // tile_b
    if num_tiles % 2 == 0:
        num_parallel = 2            # harmless loop on 1-core chips, ~2x on v7x
    elif num_tiles > 1 and _tpu_num_cores() >= 2:
        # Pad one extra fully-masked tile rather than idling a TensorCore.
        num_tiles += 1
        b_pad = num_tiles * tile_b
        num_parallel = 2
    else:
        num_parallel = 1
    row_steps = num_tiles // num_parallel

    return dict(tile_b=tile_b, tile_c=tile_c, b_pad=b_pad, c_pad=c_pad,
                num_parallel=num_parallel, row_steps=row_steps,
                class_steps=class_steps, vmem_limit=vmem_limit)


# ----------------------------------------------------------------------------
# Wrapper
# ----------------------------------------------------------------------------
def distil_loss(x, target, *, tile_b=None, tile_c=None):
    assert x.ndim == 2 and x.shape == target.shape
    B, C = x.shape
    plan = _plan(B, C, jnp.dtype(x.dtype).itemsize,
                 jnp.dtype(target.dtype).itemsize, tile_b=tile_b, tile_c=tile_c)
    tb, tc = plan["tile_b"], plan["tile_c"]
    b_pad, c_pad = plan["b_pad"], plan["c_pad"]
    num_parallel = plan["num_parallel"]
    row_steps = plan["row_steps"]
    class_steps = plan["class_steps"]

    # Pad the class axis with a very negative value (exp -> 0, so padded
    # columns perturb neither softmax), then pad rows with zeros (padded rows
    # produce a finite loss and are masked in-kernel; mean divides by true B).
    if c_pad != C:
        x = jnp.pad(x, ((0, 0), (0, c_pad - C)), constant_values=_NEG_PAD)
        target = jnp.pad(target, ((0, 0), (0, c_pad - C)),
                         constant_values=_NEG_PAD)
    if b_pad != B:
        x = jnp.pad(x, ((0, b_pad - B), (0, 0)))
        target = jnp.pad(target, ((0, b_pad - B), (0, 0)))

    kernel = _make_kernel(B, tb, row_steps, need_row_mask=(b_pad != B))

    partial = pl.pallas_call(
        kernel,
        out_shape=jax.ShapeDtypeStruct((num_parallel, 1, 1), jnp.float32),
        grid_spec=pltpu.PrefetchScalarGridSpec(
            num_scalar_prefetch=0,
            grid=(num_parallel, row_steps, class_steps),
            in_specs=[
                pl.BlockSpec((tb, tc), lambda c, i, k: (c * row_steps + i, k)),
                pl.BlockSpec((tb, tc), lambda c, i, k: (c * row_steps + i, k)),
            ],
            out_specs=pl.BlockSpec((1, 1, 1), lambda c, i, k: (c, 0, 0)),
            scratch_shapes=[pltpu.VMEM((tb, 1), jnp.float32)] * 5,
        ),
        compiler_params=pltpu.CompilerParams(
            dimension_semantics=("parallel", "arbitrary", "arbitrary"),
            vmem_limit_bytes=plan["vmem_limit"],
        ),
    )(x, target)

    # Cross-core reduce + mean over the TRUE batch size in the wrapper.
    return jnp.sum(partial) / jnp.float32(B)


def _distil_loss_ref(x, target):
    xf = x.astype(jnp.float32)
    tf = target.astype(jnp.float32)
    return jnp.mean(jnp.sum(-jax.nn.softmax(tf, axis=-1)
                            * jax.nn.log_softmax(xf, axis=-1), axis=-1))


if __name__ == "__main__":
    key = jax.random.PRNGKey(0)
    keys = jax.random.split(key, 6)

    # 1) canonical small shape (full-row tile, single grid step)
    x1 = jax.random.normal(keys[0], (8, 32), dtype=jnp.float32)
    t1 = jax.random.normal(keys[1], (8, 32), dtype=jnp.float32)
    got1 = jax.block_until_ready(distil_loss(x1, t1))
    ref1 = _distil_loss_ref(x1, t1)
    assert jnp.allclose(got1, ref1, rtol=1e-5, atol=1e-5), (got1, ref1)

    # 2) batch not a multiple of the sublane tile -> padded + masked rows
    x2 = jax.random.normal(keys[2], (10, 32), dtype=jnp.float32)
    t2 = jax.random.normal(keys[3], (10, 32), dtype=jnp.float32)
    got2 = jax.block_until_ready(distil_loss(x2, t2))
    ref2 = _distil_loss_ref(x2, t2)
    assert jnp.allclose(got2, ref2, rtol=1e-5, atol=1e-5), (got2, ref2)

    # 3) class-axis tiling (online LSE across 3 lane chunks) + 2-way row split
    x3 = jax.random.normal(keys[4], (16, 384), dtype=jnp.float32)
    t3 = jax.random.normal(keys[5], (16, 384), dtype=jnp.float32)
    got3 = jax.block_until_ready(distil_loss(x3, t3, tile_c=128))
    ref3 = _distil_loss_ref(x3, t3)
    assert jnp.allclose(got3, ref3, rtol=1e-5, atol=1e-5), (got3, ref3)

    print("KERNEL_OK")
</pallas_src>

<mosaic_0001>
module attributes {stable_mosaic.version = 11 : i64} {
  func.func @kernel(%arg0: i32, %arg1: i32, %arg2: i32, %arg3: memref<8x32xf32, #tpu.memory_space<vmem>>, %arg4: memref<8x32xf32, #tpu.memory_space<vmem>>, %arg5: memref<1x1x1xf32, #tpu.memory_space<vmem>>, %arg6: memref<8x1xf32, #tpu.memory_space<vmem>>, %arg7: memref<8x1xf32, #tpu.memory_space<vmem>>, %arg8: memref<8x1xf32, #tpu.memory_space<vmem>>, %arg9: memref<8x1xf32, #tpu.memory_space<vmem>>, %arg10: memref<8x1xf32, #tpu.memory_space<vmem>>) attributes {dimension_semantics = [#tpu.dimension_semantics<parallel>, #tpu.dimension_semantics<arbitrary>, #tpu.dimension_semantics<arbitrary>], iteration_bounds = array<i64: 1, 1, 1>, scalar_prefetch = 0 : i64, scratch_operands = 5 : i64, tpu.core_type = #tpu.core_type<tc>, window_params = [{transform_indices = @transform_0, window_bounds = array<i64: 8, 32>}, {transform_indices = @transform_1, window_bounds = array<i64: 8, 32>}, {transform_indices = @transform_2, window_bounds = array<i64: 1, 1, 1>}]} {
    %c0_i32 = arith.constant 0 : i32
    %0 = arith.cmpi eq, %arg1, %c0_i32 : i32
    %c0_i32_0 = arith.constant 0 : i32
    %1 = arith.cmpi eq, %arg2, %c0_i32_0 : i32
    %2 = arith.andi %0, %1 : i1
    %3 = arith.extui %2 : i1 to i32
    %c0_i32_1 = arith.constant 0 : i32
    %4 = arith.cmpi ne, %3, %c0_i32_1 : i32
    scf.if %4 {
      %cst_33 = arith.constant 0.000000e+00 : f32
      %52 = vector.broadcast %cst_33 : f32 to vector<1x1x1xf32>
      %c0_34 = arith.constant 0 : index
      %c0_35 = arith.constant 0 : index
      %c0_36 = arith.constant 0 : index
      %53 = vector.load %arg5[%c0_34, %c0_35, %c0_36] : memref<1x1x1xf32, #tpu.memory_space<vmem>>, vector<1x1x1xf32>
      tpu.vector_store %arg5[%c0_34, %c0_35, %c0_36], %52 {strides = array<i32>} : memref<1x1x1xf32, #tpu.memory_space<vmem>>, vector<1x1x1xf32>,
    } else {
    }
    %c0_i32_2 = arith.constant 0 : i32
    %5 = arith.cmpi eq, %arg2, %c0_i32_2 : i32
    %6 = arith.extui %5 : i1 to i32
    %c0_i32_3 = arith.constant 0 : i32
    %7 = arith.cmpi ne, %6, %c0_i32_3 : i32
    scf.if %7 {
      %cst_33 = arith.constant 0xFF800000 : f32
      %52 = vector.broadcast %cst_33 : f32 to vector<8x1xf32>
      %c0_34 = arith.constant 0 : index
      %c0_35 = arith.constant 0 : index
      %53 = vector.load %arg6[%c0_34, %c0_35] : memref<8x1xf32, #tpu.memory_space<vmem>>, vector<8x1xf32>
      tpu.vector_store %arg6[%c0_34, %c0_35], %52 {strides = array<i32>} : memref<8x1xf32, #tpu.memory_space<vmem>>, vector<8x1xf32>,
      %cst_36 = arith.constant 0.000000e+00 : f32
      %54 = vector.broadcast %cst_36 : f32 to vector<8x1xf32>
      %c0_37 = arith.constant 0 : index
      %c0_38 = arith.constant 0 : index
      %55 = vector.load %arg7[%c0_37, %c0_38] : memref<8x1xf32, #tpu.memory_space<vmem>>, vector<8x1xf32>
      tpu.vector_store %arg7[%c0_37, %c0_38], %54 {strides = array<i32>} : memref<8x1xf32, #tpu.memory_space<vmem>>, vector<8x1xf32>,
      %cst_39 = arith.constant 0xFF800000 : f32
      %56 = vector.broadcast %cst_39 : f32 to vector<8x1xf32>
      %c0_40 = arith.constant 0 : index
      %c0_41 = arith.constant 0 : index
      %57 = vector.load %arg8[%c0_40, %c0_41] : memref<8x1xf32, #tpu.memory_space<vmem>>, vector<8x1xf32>
      tpu.vector_store %arg8[%c0_40, %c0_41], %56 {strides = array<i32>} : memref<8x1xf32, #tpu.memory_space<vmem>>, vector<8x1xf32>,
      %cst_42 = arith.constant 0.000000e+00 : f32
      %58 = vector.broadcast %cst_42 : f32 to vector<8x1xf32>
      %c0_43 = arith.constant 0 : index
      %c0_44 = arith.constant 0 : index
      %59 = vector.load %arg9[%c0_43, %c0_44] : memref<8x1xf32, #tpu.memory_space<vmem>>, vector<8x1xf32>
      tpu.vector_store %arg9[%c0_43, %c0_44], %58 {strides = array<i32>} : memref<8x1xf32, #tpu.memory_space<vmem>>, vector<8x1xf32>,
      %cst_45 = arith.constant 0.000000e+00 : f32
      %60 = vector.broadcast %cst_45 : f32 to vector<8x1xf32>
      %c0_46 = arith.constant 0 : index
      %c0_47 = arith.constant 0 : index
      %61 = vector.load %arg10[%c0_46, %c0_47] : memref<8x1xf32, #tpu.memory_space<vmem>>, vector<8x1xf32>
      tpu.vector_store %arg10[%c0_46, %c0_47], %60 {strides = array<i32>} : memref<8x1xf32, #tpu.memory_space<vmem>>, vector<8x1xf32>,
    } else {
    }
    %c0 = arith.constant 0 : index
    %c0_4 = arith.constant 0 : index
    %8 = vector.load %arg3[%c0, %c0_4] : memref<8x32xf32, #tpu.memory_space<vmem>>, vector<8x32xf32>
    %c0_5 = arith.constant 0 : index
    %c0_6 = arith.constant 0 : index
    %9 = vector.load %arg4[%c0_5, %c0_6] : memref<8x32xf32, #tpu.memory_space<vmem>>, vector<8x32xf32>
    %c0_7 = arith.constant 0 : index
    %c0_8 = arith.constant 0 : index
    %10 = vector.load %arg6[%c0_7, %c0_8] : memref<8x1xf32, #tpu.memory_space<vmem>>, vector<8x1xf32>
    %cst = arith.constant dense<0xFF800000> : vector<8xf32>
    %11 = vector.multi_reduction <maximumf>, %8, %cst [1] : vector<8x32xf32> to vector<8xf32>
    %12 = vector.shape_cast %11 : vector<8xf32> to vector<8x1xf32>
    %13 = arith.maximumf %10, %12 : vector<8x1xf32>
    %14 = arith.subf %10, %13 : vector<8x1xf32>
    %15 = math.exp %14 : vector<8x1xf32>
    %c0_9 = arith.constant 0 : index
    %c0_10 = arith.constant 0 : index
    %16 = vector.load %arg7[%c0_9, %c0_10] : memref<8x1xf32, #tpu.memory_space<vmem>>, vector<8x1xf32>
    %17 = arith.mulf %16, %15 : vector<8x1xf32>
    %18 = vector.broadcast %13 : vector<8x1xf32> to vector<8x32xf32>
    %19 = arith.subf %8, %18 : vector<8x32xf32>
    %20 = math.exp %19 : vector<8x32xf32>
    %cst_11 = arith.constant dense<0.000000e+00> : vector<8xf32>
    %21 = vector.multi_reduction <add>, %20, %cst_11 [1] : vector<8x32xf32> to vector<8xf32>
    %22 = vector.shape_cast %21 : vector<8xf32> to vector<8x1xf32>
    %23 = arith.addf %17, %22 : vector<8x1xf32>
    %c0_12 = arith.constant 0 : index
    %c0_13 = arith.constant 0 : index
    %24 = vector.load %arg7[%c0_12, %c0_13] : memref<8x1xf32, #tpu.memory_space<vmem>>, vector<8x1xf32>
    tpu.vector_store %arg7[%c0_12, %c0_13], %23 {strides = array<i32>} : memref<8x1xf32, #tpu.memory_space<vmem>>, vector<8x1xf32>,
    %c0_14 = arith.constant 0 : index
    %c0_15 = arith.constant 0 : index
    %25 = vector.load %arg6[%c0_14, %c0_15] : memref<8x1xf32, #tpu.memory_space<vmem>>, vector<8x1xf32>
    tpu.vector_store %arg6[%c0_14, %c0_15], %13 {strides = array<i32>} : memref<8x1xf32, #tpu.memory_space<vmem>>, vector<8x1xf32>,
    %c0_16 = arith.constant 0 : index
    %c0_17 = arith.constant 0 : index
    %26 = vector.load %arg8[%c0_16, %c0_17] : memref<8x1xf32, #tpu.memory_space<vmem>>, vector<8x1xf32>
    %cst_18 = arith.constant dense<0xFF800000> : vector<8xf32>
    %27 = vector.multi_reduction <maximumf>, %9, %cst_18 [1] : vector<8x32xf32> to vector<8xf32>
    %28 = vector.shape_cast %27 : vector<8xf32> to vector<8x1xf32>
    %29 = arith.maximumf %26, %28 : vector<8x1xf32>
    %30 = arith.subf %26, %29 : vector<8x1xf32>
    %31 = math.exp %30 : vector<8x1xf32>
    %32 = vector.broadcast %29 : vector<8x1xf32> to vector<8x32xf32>
    %33 = arith.subf %9, %32 : vector<8x32xf32>
    %34 = math.exp %33 : vector<8x32xf32>
    %c0_19 = arith.constant 0 : index
    %c0_20 = arith.constant 0 : index
    %35 = vector.load %arg9[%c0_19, %c0_20] : memref<8x1xf32, #tpu.memory_space<vmem>>, vector<8x1xf32>
    %36 = arith.mulf %35, %31 : vector<8x1xf32>
    %cst_21 = arith.constant dense<0.000000e+00> : vector<8xf32>
    %37 = vector.multi_reduction <add>, %34, %cst_21 [1] : vector<8x32xf32> to vector<8xf32>
    %38 = vector.shape_cast %37 : vector<8xf32> to vector<8x1xf32>
    %39 = arith.addf %36, %38 : vector<8x1xf32>
    %c0_22 = arith.constant 0 : index
    %c0_23 = arith.constant 0 : index
    %40 = vector.load %arg9[%c0_22, %c0_23] : memref<8x1xf32, #tpu.memory_space<vmem>>, vector<8x1xf32>
    tpu.vector_store %arg9[%c0_22, %c0_23], %39 {strides = array<i32>} : memref<8x1xf32, #tpu.memory_space<vmem>>, vector<8x1xf32>,
    %c0_24 = arith.constant 0 : index
    %c0_25 = arith.constant 0 : index
    %41 = vector.load %arg10[%c0_24, %c0_25] : memref<8x1xf32, #tpu.memory_space<vmem>>, vector<8x1xf32>
    %42 = arith.mulf %41, %31 : vector<8x1xf32>
    %43 = arith.mulf %34, %8 : vector<8x32xf32>
    %cst_26 = arith.constant dense<0.000000e+00> : vector<8xf32>
    %44 = vector.multi_reduction <add>, %43, %cst_26 [1] : vector<8x32xf32> to vector<8xf32>
    %45 = vector.shape_cast %44 : vector<8xf32> to vector<8x1xf32>
    %46 = arith.addf %42, %45 : vector<8x1xf32>
    %c0_27 = arith.constant 0 : index
    %c0_28 = arith.constant 0 : index
    %47 = vector.load %arg10[%c0_27, %c0_28] : memref<8x1xf32, #tpu.memory_space<vmem>>, vector<8x1xf32>
    tpu.vector_store %arg10[%c0_27, %c0_28], %46 {strides = array<i32>} : memref<8x1xf32, #tpu.memory_space<vmem>>, vector<8x1xf32>,
    %c0_29 = arith.constant 0 : index
    %c0_30 = arith.constant 0 : index
    %48 = vector.load %arg8[%c0_29, %c0_30] : memref<8x1xf32, #tpu.memory_space<vmem>>, vector<8x1xf32>
    tpu.vector_store %arg8[%c0_29, %c0_30], %29 {strides = array<i32>} : memref<8x1xf32, #tpu.memory_space<vmem>>, vector<8x1xf32>,
    %c0_i32_31 = arith.constant 0 : i32
    %49 = arith.cmpi eq, %arg2, %c0_i32_31 : i32
    %50 = arith.extui %49 : i1 to i32
    %c0_i32_32 = arith.constant 0 : i32
    %51 = arith.cmpi ne, %50, %c0_i32_32 : i32
    scf.if %51 {
      %c0_33 = arith.constant 0 : index
      %c0_34 = arith.constant 0 : index
      %52 = vector.load %arg6[%c0_33, %c0_34] : memref<8x1xf32, #tpu.memory_space<vmem>>, vector<8x1xf32>
      %c0_35 = arith.constant 0 : index
      %c0_36 = arith.constant 0 : index
      %53 = vector.load %arg7[%c0_35, %c0_36] : memref<8x1xf32, #tpu.memory_space<vmem>>, vector<8x1xf32>
      %54 = math.log %53 : vector<8x1xf32>
      %55 = arith.addf %52, %54 : vector<8x1xf32>
      %c0_37 = arith.constant 0 : index
      %c0_38 = arith.constant 0 : index
      %56 = vector.load %arg10[%c0_37, %c0_38] : memref<8x1xf32, #tpu.memory_space<vmem>>, vector<8x1xf32>
      %c0_39 = arith.constant 0 : index
      %c0_40 = arith.constant 0 : index
      %57 = vector.load %arg9[%c0_39, %c0_40] : memref<8x1xf32, #tpu.memory_space<vmem>>, vector<8x1xf32>
      %58 = arith.divf %56, %57 : vector<8x1xf32>
      %59 = arith.subf %55, %58 : vector<8x1xf32>
      %c0_41 = arith.constant 0 : index
      %c0_42 = arith.constant 0 : index
      %c0_43 = arith.constant 0 : index
      %60 = vector.load %arg5[%c0_41, %c0_42, %c0_43] : memref<1x1x1xf32, #tpu.memory_space<vmem>>, vector<1x1x1xf32>
      %61 = vector.shape_cast %59 : vector<8x1xf32> to vector<1x8x1xf32>
      %cst_44 = arith.constant dense<0.000000e+00> : vector<1xf32>
      %62 = vector.multi_reduction <add>, %61, %cst_44 [1, 2] : vector<1x8x1xf32> to vector<1xf32>
      %63 = vector.shape_cast %62 : vector<1xf32> to vector<1x1x1xf32>
      %64 = vector.extract %63[0, 0, 0] : f32 from vector<1x1x1xf32>
      %65 = vector.broadcast %64 : f32 to vector<1x1x1xf32>
      %66 = arith.addf %60, %65 : vector<1x1x1xf32>
      %c0_45 = arith.constant 0 : index
      %c0_46 = arith.constant 0 : index
      %c0_47 = arith.constant 0 : index
      %67 = vector.load %arg5[%c0_45, %c0_46, %c0_47] : memref<1x1x1xf32, #tpu.memory_space<vmem>>, vector<1x1x1xf32>
      tpu.vector_store %arg5[%c0_45, %c0_46, %c0_47], %66 {strides = array<i32>} : memref<1x1x1xf32, #tpu.memory_space<vmem>>, vector<1x1x1xf32>,
    } else {
    }
    return
  }
  func.func @transform_0(%arg0: i32, %arg1: i32, %arg2: i32) -> (i32, i32) {
    %c1_i32 = arith.constant 1 : i32
    %0 = arith.muli %arg0, %c1_i32 : i32
    %1 = arith.addi %0, %arg1 : i32
    %c0_i32 = arith.constant 0 : i32
    return %1, %arg2 : i32, i32
  }
  func.func @transform_1(%arg0: i32, %arg1: i32, %arg2: i32) -> (i32, i32) {
    %c1_i32 = arith.constant 1 : i32
    %0 = arith.muli %arg0, %c1_i32 : i32
    %1 = arith.addi %0, %arg1 : i32
    %c0_i32 = arith.constant 0 : i32
    return %1, %arg2 : i32, i32
  }
  func.func @transform_2(%arg0: i32, %arg1: i32, %arg2: i32) -> (i32, i32, i32) {
    %c0_i32 = arith.constant 0 : i32
    %c0_i32_0 = arith.constant 0 : i32
    %c0_i32_1 = arith.constant 0 : i32
    return %arg0, %c0_i32, %c0_i32_0 : i32, i32, i32
  }
}

</mosaic_0001>

<llo_original>
// kernel: tpu_custom_call.1
$region0: #{tpu_custom_call.1}
  #allocation0 [shape = 'u32[]', space=smem, size = 0x4, offset = 0x4, fixed_abs, tag = 'smem constant byte address 0x4 - core index']
  #allocation1 [shape = 'u32[144,128]{1,0:T(1,128)}', space=vmem, size = 0x12000, scoped, tag = 'internal scratch']
  #allocation2 [shape = 'f32[8,1]{1,0:T(8,128)}', space=vmem, size = 0x1000, scoped, tag = 'scratch operand']
  #allocation3 [shape = 'f32[8,1]{1,0:T(8,128)}', space=vmem, size = 0x1000, scoped, tag = 'scratch operand']
  #allocation4 [shape = 'f32[8,1]{1,0:T(8,128)}', space=vmem, size = 0x1000, scoped, tag = 'scratch operand']
  #allocation5 [shape = 'f32[8,1]{1,0:T(8,128)}', space=vmem, size = 0x1000, scoped, tag = 'scratch operand']
  #allocation6 [shape = 'f32[8,1]{1,0:T(8,128)}', space=vmem, size = 0x1000, scoped, tag = 'scratch operand']
  %s0 = inlined_call_operand.hbm [shape: f32[8,32], index: 0, kind: input, shape index: {}]
  %s1 = inlined_call_operand.hbm [shape: f32[8,32], index: 1, kind: input, shape index: {}]
  %s2 = inlined_call_operand.hbm [shape: f32[1,1,1], index: 2, kind: output, shape index: {}]
  %s3 = sld [smem:[#allocation0]]
  $region38: #{tpu_custom_call.1} parent=0
    _
  %s5 = ssub.s32 1, %s3
  %s6 = scalar_select 0, %s5, %s3
  $region1: #{tpu_custom_call.1} parent=0
    #allocation7 [shape = 'u8[4096]{0}', space=vmem, size = 0x1000, scoped, tag = 'input window, operand 0, single buffered']
    #allocation8 [shape = 's32[1]{0}', space=sflag, size = 0x4, scoped, tag = 'scoped memory for tpu_custom_call.1']
    #allocation9 [shape = 's32[1]{0}', space=sflag, size = 0x4, scoped, tag = 'scoped memory for tpu_custom_call.1']
    #allocation10 [shape = 'u8[4096]{0}', space=vmem, size = 0x1000, scoped, tag = 'input window, operand 1, single buffered']
    #allocation11 [shape = 's32[1]{0}', space=sflag, size = 0x4, scoped, tag = 'scoped memory for tpu_custom_call.1']
    #allocation12 [shape = 'u8[512]{0}', space=vmem, size = 0x400, scoped, tag = 'output window, operand 0, single buffered']
    %7 = vsyncpa [#allocation8], 0
    %8 = vsyncpa [#allocation11], 0
    %9 = vsyncpa [#allocation9], 0
    // Predicated region
    $region2: #{tpu_custom_call.1} parent=1 // pred_check
      _
    $region3: #{tpu_custom_call.1} parent=1 // pred_check_branch
      %11 = sbr.rel (0) target = $region5
    $region4: #{tpu_custom_call.1} parent=1 // pred_region
      %s12 = sadd.s32 0, 0
      %s14 = ssub.s32 128, 128
      %15 = vsyncadd [#allocation8], %s14
      %s16 = smul.addr %s12, 128
      %s17 = scalar_lea.hbm %s0, %s16
      %s19 = sshll.u32 [#allocation7], 4
      %s20 = int_to_ptr.vmem [resolvable:$true] %s19
      %22 = dma.hbm_to_vmem [thread:$0]  %s17, 128, %s20, [#allocation8]
    $region5: #{tpu_custom_call.1} parent=1 // pred_fallthru
      _
    // Predicated region
    $region6: #{tpu_custom_call.1} parent=1 // pred_check
      _
    $region7: #{tpu_custom_call.1} parent=1 // pred_check_branch
      %24 = sbr.rel (0) target = $region9
    $region8: #{tpu_custom_call.1} parent=1 // pred_region
      %s25 = sadd.s32 0, 0
      %s27 = ssub.s32 128, 128
      %28 = vsyncadd [#allocation11], %s27
      %s29 = smul.addr %s25, 128
      %s30 = scalar_lea.hbm %s1, %s29
      %s32 = sshll.u32 [#allocation10], 4
      %s33 = int_to_ptr.vmem [resolvable:$true] %s32
      %35 = dma.hbm_to_vmem [thread:$0]  %s30, 128, %s33, [#allocation11]
    $region9: #{tpu_custom_call.1} parent=1 // pred_fallthru
      _
    // Predicated region
    $region10: #{tpu_custom_call.1} parent=1 // pred_check
      _
    $region11: #{tpu_custom_call.1} parent=1 // pred_check_branch
      %37 = sbr.rel (0) target = $region13
    $region12: #{tpu_custom_call.1} parent=1 // pred_region
      %38 = dma.done [#allocation8], 128
    $region13: #{tpu_custom_call.1} parent=1 // pred_fallthru
      _
    // Predicated region
    $region14: #{tpu_custom_call.1} parent=1 // pred_check
      _
    $region15: #{tpu_custom_call.1} parent=1 // pred_check_branch
      %40 = sbr.rel (0) target = $region17
    $region16: #{tpu_custom_call.1} parent=1 // pred_region
      %41 = dma.done [#allocation11], 128
    $region17: #{tpu_custom_call.1} parent=1 // pred_fallthru
      _
    %s42 = sadd.s32 0, 0
    %s43 = sadd.s32 0, 0
    %p44 = scmp.eq.s32.totalorder 0, 0
    %p45 = scmp.eq.s32.totalorder 0, 0
    %p46 = pnand %p44, %p45
    %p47 = pneg %p46
    // Predicated region
    $region18: #{tpu_custom_call.1} parent=1 // pred_check
      _
    $region19: #{tpu_custom_call.1} parent=1 // pred_check_branch
      %49 = sbr.rel (%p46) target = $region21
    $region20: #{tpu_custom_call.1} parent=1 // pred_region
      %vm50 = vcmask 0
      %51 = vst.msk [vmem:[#allocation12] sm:$0x1] %vm50, 0.0
    $region21: #{tpu_custom_call.1} parent=1 // pred_fallthru
      _
    // Predicated region
    $region22: #{tpu_custom_call.1} parent=1 // pred_check
      %p52 = pneg %p45
    $region23: #{tpu_custom_call.1} parent=1 // pred_check_branch
      %54 = sbr.rel (%p52) target = $region25
    $region24: #{tpu_custom_call.1} parent=1 // pred_region
      %vm55 = vcmask 7168
      %56 = vst.msk [vmem:[#allocation2] sm:$0xff] %vm55, -inf
      %57 = vst.msk [vmem:[#allocation3] sm:$0xff] %vm55, 0.0
      %58 = vst.msk [vmem:[#allocation4] sm:$0xff] %vm55, -inf
      %59 = vst.msk [vmem:[#allocation5] sm:$0xff] %vm55, 0.0
      %60 = vst.msk [vmem:[#allocation6] sm:$0xff] %vm55, 0.0
    $region25: #{tpu_custom_call.1} parent=1 // pred_fallthru
      _
    %v61 = vld [vmem:[#allocation7] sm:$0xff]
    %v62 = vld [vmem:[#allocation10] sm:$0xff]
    %v63 = vld [vmem:[#allocation2] sm:$0xff]
    %vm64 = vcmask 261120
    %v65 = vsel %vm64, %v61, -inf
    %66 = vmax.xlane.f32.xlu0 %v65
    %v67 = vpop.xlane.xlu0 %66
    %v68 = vmax.f32 %v63, %v67
    %v69 = vsub.f32 %v63, %v68
    %v70 = vmul.f32 %v69, 1.442695
    %v71 = vpow.pop %v70
    %v72 = vld [vmem:[#allocation3] sm:$0xff]
    %v73 = vmul.f32 %v72, %v71
    %75 = vset.pattern.permute.xlu0 0
    %76 = vperm.xlu0 %75, %v68
    %v77 = vpop.permute.xlu0 %76
    %v79 = vsub.f32 %v61, %v77
    %v80 = vmul.f32 %v79, 1.442695
    %v81 = vpow.pop %v80
    %v82 = vsel %vm64, %v81, 0.0
    %83 = vadd.xlane.f32.xlu0 %v82
    %v84 = vpop.xlane.xlu0 %83
    %v85 = vadd.f32 %v73, %v84
    %vm86 = vcmask 7168
    %87 = vst.msk [vmem:[#allocation3] sm:$0xff] %vm86, %v85
    %88 = vst.msk [vmem:[#allocation2] sm:$0xff] %vm86, %v68
    %v89 = vld [vmem:[#allocation4] sm:$0xff]
    %v90 = vsel %vm64, %v62, -inf
    %91 = vmax.xlane.f32.xlu0 %v90
    %v92 = vpop.xlane.xlu0 %91
    %v93 = vmax.f32 %v89, %v92
    %v94 = vsub.f32 %v89, %v93
    %v95 = vmul.f32 %v94, 1.442695
    %v96 = vpow.pop %v95
    %98 = vset.pattern.permute.xlu0 0
    %99 = vperm.xlu0 %98, %v93
    %v100 = vpop.permute.xlu0 %99
    %v102 = vsub.f32 %v62, %v100
    %v103 = vmul.f32 %v102, 1.442695
    %v104 = vpow.pop %v103
    %v105 = vld [vmem:[#allocation5] sm:$0xff]
    %v106 = vmul.f32 %v105, %v96
    %v107 = vsel %vm64, %v104, 0.0
    %108 = vadd.xlane.f32.xlu0 %v107
    %v109 = vpop.xlane.xlu0 %108
    %v110 = vadd.f32 %v106, %v109
    %111 = vst.msk [vmem:[#allocation5] sm:$0xff] %vm86, %v110
    %v112 = vld [vmem:[#allocation6] sm:$0xff]
    %v113 = vmul.f32 %v112, %v96
    %v114 = vmul.f32 %v104, %v61
    %v115 = vsel %vm64, %v114, 0.0
    %116 = vadd.xlane.f32.xlu0 %v115
    %v117 = vpop.xlane.xlu0 %116
    %v118 = vadd.f32 %v113, %v117
    %119 = vst.msk [vmem:[#allocation6] sm:$0xff] %vm86, %v118
    %120 = vst.msk [vmem:[#allocation4] sm:$0xff] %vm86, %v93
    // Predicated region
    $region26: #{tpu_custom_call.1} parent=1 // pred_check
      %p121 = pneg %p45
    $region27: #{tpu_custom_call.1} parent=1 // pred_check_branch
      %123 = sbr.rel (%p121) target = $region29
    $region28: #{tpu_custom_call.1} parent=1 // pred_region
      %v124 = vld [vmem:[#allocation2] sm:$0xff]
      %v125 = vld [vmem:[#allocation3] sm:$0xff]
      %v126 = vlog2.pop %v125
      %v127 = vmul.f32 %v126, 0.6931472
      %v128 = vadd.f32 %v124, %v127
      %v129 = vld [vmem:[#allocation6] sm:$0xff]
      %v130 = vld [vmem:[#allocation5] sm:$0xff]
      %v131 = vrcp.pop %v130
      %v132 = vmul.f32 %v129, %v131
      %v133 = vsub.f32 %v128, %v132
      %v134 = vld [vmem:[#allocation12] sm:$0x1]
      %v135 = vsel %vm86, %v133, 0.0
      %136 = vadd.xlane.f32.xlu0 %v135
      %v137 = vpop.xlane.xlu0 %136
      %v138 = vrot.slane %v137, 4
      %v139 = vadd.f32 %v137, %v138
      %v140 = vrot.slane %v139, 2
      %v141 = vadd.f32 %v139, %v140
      %v142 = vrot.slane %v141, 1
      %v143 = vadd.f32 %v141, %v142
      %s144 = vtos %v143
      %v145 = vstv %s144
      %v146 = vadd.f32 %v134, %v145
      %vm147 = vcmask 0
      %148 = vst.msk [vmem:[#allocation12] sm:$0x1] %vm147, %v146
    $region29: #{tpu_custom_call.1} parent=1 // pred_fallthru
      _
    // Predicated region
    $region30: #{tpu_custom_call.1} parent=1 // pred_check
      _
    $region31: #{tpu_custom_call.1} parent=1 // pred_check_branch
      %150 = sbr.rel (0) target = $region33
    $region32: #{tpu_custom_call.1} parent=1 // pred_region
      %s152 = ssub.s32 16, 16
      %153 = vsyncadd [#allocation9], %s152
      %s155 = sshll.u32 [#allocation12], 4
      %s156 = int_to_ptr.vmem [resolvable:$true] %s155
      %158 = dma.vmem_to_hbm [thread:$0]  %s156, 16, %s2, [#allocation9]
    $region33: #{tpu_custom_call.1} parent=1 // pred_fallthru
      _
    // Predicated region
    $region34: #{tpu_custom_call.1} parent=1 // pred_check
      _
    $region35: #{tpu_custom_call.1} parent=1 // pred_check_branch
      %160 = sbr.rel (0) target = $region37
    $region36: #{tpu_custom_call.1} parent=1 // pred_region
      %161 = dma.done [#allocation9], 16
    $region37: #{tpu_custom_call.1} parent=1 // pred_fallthru
      _
    %162 = vsyncpa [#allocation8], 1
    %163 = vsyncpa [#allocation11], 1
    %164 = vsyncpa [#allocation9], 1

</llo_original>
